<compile_context>
chip_gen: v7x
topology: tpu7x:2x2x1
jax: 0.10.0
libtpu: 0.0.40
codegen_flags: <defaults>
</compile_context>

<pallas_src>
import math
import functools

import jax
import jax.numpy as jnp
from jax.experimental import pallas as pl
from jax.experimental.pallas import tpu as pltpu


# ---------------------------------------------------------------------------
# Kernel 1: fused QKV projection over flattened (B*S, E) row blocks.
# ---------------------------------------------------------------------------
def _qkv_proj_kernel(x_ref, wq_ref, wk_ref, wv_ref, bq_ref, bk_ref, bv_ref,
                     q_ref, k_ref, v_ref):
    # x_ref is f32; cast to the MXU dtype in-kernel (free under the matmul) so the
    # wrapper never makes an extra HBM pass just to change dtype.
    x = x_ref[...].astype(wq_ref.dtype)                       # (rb, E)
    q = jnp.dot(x, wq_ref[...], preferred_element_type=jnp.float32) + bq_ref[...]
    q_ref[...] = q.astype(q_ref.dtype)
    k = jnp.dot(x, wk_ref[...], preferred_element_type=jnp.float32) + bk_ref[...]
    k_ref[...] = k.astype(k_ref.dtype)
    v = jnp.dot(x, wv_ref[...], preferred_element_type=jnp.float32) + bv_ref[...]
    v_ref[...] = v.astype(v_ref.dtype)


# ---------------------------------------------------------------------------
# Kernel 2: flash-style attention (online softmax) + output projection.
# Grid: (B, num_q_blocks, num_kv_blocks); kv axis is the reduction axis.
# ---------------------------------------------------------------------------
def _flash_mhsa_kernel(q_ref, k_ref, v_ref, wo_ref, bo_ref, o_ref,
                       m_scr, l_scr, acc_scr, *, num_heads, head_dim):
    ki = pl.program_id(2)
    n_kv = pl.num_programs(2)
    H, d = num_heads, head_dim
    tq = q_ref.shape[1]
    E = wo_ref.shape[1]

    @pl.when(ki == 0)
    def _init():
        m_scr[...] = jnp.full_like(m_scr, -jnp.inf)
        l_scr[...] = jnp.zeros_like(l_scr)
        acc_scr[...] = jnp.zeros_like(acc_scr)

    q = q_ref[0]          # (tq, E)  -- Q columns already scaled by 1/sqrt(d)
    k = k_ref[0]          # (tk, E)
    v = v_ref[0]          # (tk, E)

    # Static per-head loop; all mutable per-head state lives in head-major scratch so
    # every update below is a full-tile read-modify-write (no lane-offset masked stores).
    # TODO(synk): switch to lax.fori_loop with pl.ds head slices when H >= 16.
    for h in range(H):
        lo = h * d
        qh = q[:, lo:lo + d]                                              # (tq, d)
        kh = k[:, lo:lo + d]                                              # (tk, d)
        vh = v[:, lo:lo + d]                                              # (tk, d)

        # scores_h = qh @ kh^T  (contraction over the head dim, f32 accumulation)
        s = jax.lax.dot_general(qh, kh, (((1,), (1,)), ((), ())),
                                preferred_element_type=jnp.float32)       # (tq, tk)

        m_prev = m_scr[h]                                                 # (tq, 1)
        m_new = jnp.maximum(m_prev, jnp.max(s, axis=-1, keepdims=True))
        alpha = jnp.exp(m_prev - m_new)                                   # (tq, 1)
        p = jnp.exp(s - m_new)                                            # (tq, tk) f32

        l_scr[h] = alpha * l_scr[h] + jnp.sum(p, axis=-1, keepdims=True)
        acc_scr[h] = alpha * acc_scr[h] + jnp.dot(
            p.astype(v.dtype), vh, preferred_element_type=jnp.float32)
        m_scr[h] = m_new

    @pl.when(ki == n_kv - 1)
    def _finalize():
        # Normalize each head and fold the head merge into the out-projection:
        #   out = sum_h (acc_h / l_h) @ Wo[h*d:(h+1)*d, :]
        # Wo row slices are sublane-aligned (d % 8 == 0); no (H,tq,d)->(tq,E) transpose.
        out = jnp.zeros((tq, E), jnp.float32)
        for h in range(H):
            lo = h * d
            inv_l = 1.0 / l_scr[h]            # exact reciprocal (finalize only, cheap)
            ctx_h = (acc_scr[h] * inv_l).astype(wo_ref.dtype)             # (tq, d)
            out = out + jnp.dot(ctx_h, wo_ref[lo:lo + d, :],
                                preferred_element_type=jnp.float32)
        o_ref[0] = (out + bo_ref[...]).astype(o_ref.dtype)


# ---------------------------------------------------------------------------
# Wrapper helpers
# ---------------------------------------------------------------------------
def _pick_block(n, preferred):
    """Largest divisor of n <= preferred, preferring multiples of 128, then multiples
    of 8; falls back to n (full extent, always legal per the (8,128) rule)."""
    if n <= preferred:
        return n
    best8 = None
    for cand in range(preferred, 0, -1):
        if n % cand:
            continue
        if cand % 128 == 0:
            return cand
        if best8 is None and cand % 8 == 0:
            best8 = cand
    return best8 if best8 is not None else n


def _vmem_limit(n_bytes):
    """Clamp the requested scoped-VMEM limit against the chip's actual capacity."""
    cap = 64 * 1024 * 1024            # v7x per-TensorCore VMEM (smallest across gens)
    try:
        cap = int(pltpu.get_tpu_info().vmem_capacity_bytes)
    except Exception:
        pass
    return int(min(max(n_bytes, 16 * 1024 * 1024), cap - (8 * 1024 * 1024)))


def multi_head_self_attention(x, in_proj_weight, in_proj_bias,
                              out_proj_weight, out_proj_bias, *,
                              num_heads, mxu_dtype=jnp.bfloat16,
                              q_block=512, kv_block=512, proj_row_block=512):
    """x: (B, S, E) float32.  Weights follow PyTorch nn.MultiheadAttention layout:
       in_proj_weight (3E, E), in_proj_bias (3E,), out_proj_weight (E, E), out_proj_bias (E,).
       mxu_dtype: dtype of MXU operands (bf16 default); accumulation/softmax stay f32."""
    B, S, E = x.shape
    assert E % num_heads == 0
    H = num_heads
    d = E // H
    itemsize = jnp.dtype(mxu_dtype).itemsize

    # ---- one-time weight prep (plain XLA glue) ----
    scale = 1.0 / math.sqrt(d)
    w_in_t = jnp.transpose(in_proj_weight).astype(jnp.float32)            # (E, 3E)
    wq = (w_in_t[:, 0 * E:1 * E] * scale).astype(mxu_dtype)               # scale folded into Q
    wk = w_in_t[:, 1 * E:2 * E].astype(mxu_dtype)
    wv = w_in_t[:, 2 * E:3 * E].astype(mxu_dtype)
    bq = (in_proj_bias[0 * E:1 * E] * scale).reshape(1, E).astype(jnp.float32)
    bk = in_proj_bias[1 * E:2 * E].reshape(1, E).astype(jnp.float32)
    bv = in_proj_bias[2 * E:3 * E].reshape(1, E).astype(jnp.float32)
    wo = jnp.transpose(out_proj_weight).astype(mxu_dtype)                 # (E, E)
    bo = out_proj_bias.reshape(1, E).astype(jnp.float32)
    x2d = x.reshape(B * S, E)                                             # stays f32; cast in-kernel

    # -------------------- kernel 1: QKV projection --------------------
    rows = B * S
    rb = _pick_block(rows, proj_row_block)
    n_rb = rows // rb

    k1_bytes = (2 * rb * E * 4                       # x tile (f32, double-buffered)
                + 2 * 3 * E * E * itemsize           # wq/wk/wv (worst case 2 buffers)
                + 2 * 3 * E * 4                      # biases
                + 2 * 3 * rb * E * itemsize          # q/k/v output tiles
                + 3 * rb * E * 4)                    # f32 matmul results before cast
    # TODO(synk): for very large E on v7x (64 MiB VMEM), add a grid axis over the output
    # feature dim so the (E, E) weights are tiled instead of fully resident.

    q2d, k2d, v2d = pl.pallas_call(
        _qkv_proj_kernel,
        out_shape=(jax.ShapeDtypeStruct((rows, E), mxu_dtype),
                   jax.ShapeDtypeStruct((rows, E), mxu_dtype),
                   jax.ShapeDtypeStruct((rows, E), mxu_dtype)),
        grid_spec=pltpu.PrefetchScalarGridSpec(
            num_scalar_prefetch=0,
            grid=(n_rb,),
            in_specs=[
                pl.BlockSpec((rb, E), lambda r: (r, 0)),        # x rows (f32)
                pl.BlockSpec((E, E), lambda r: (0, 0)),         # wq (grid-invariant)
                pl.BlockSpec((E, E), lambda r: (0, 0)),         # wk
                pl.BlockSpec((E, E), lambda r: (0, 0)),         # wv
                pl.BlockSpec((1, E), lambda r: (0, 0)),         # bq
                pl.BlockSpec((1, E), lambda r: (0, 0)),         # bk
                pl.BlockSpec((1, E), lambda r: (0, 0)),         # bv
            ],
            out_specs=[
                pl.BlockSpec((rb, E), lambda r: (r, 0)),
                pl.BlockSpec((rb, E), lambda r: (r, 0)),
                pl.BlockSpec((rb, E), lambda r: (r, 0)),
            ],
        ),
        compiler_params=pltpu.CompilerParams(
            dimension_semantics=("parallel",),
            vmem_limit_bytes=_vmem_limit(k1_bytes + (4 << 20))),
    )(x2d, wq, wk, wv, bq, bk, bv)

    q3 = q2d.reshape(B, S, E)
    k3 = k2d.reshape(B, S, E)
    v3 = v2d.reshape(B, S, E)

    # -------------------- kernel 2: flash attention + out-proj --------------------
    tq = _pick_block(S, q_block)
    tk = _pick_block(S, kv_block)
    # v7x megacore: with B == 1 ensure there are >= 2 parallel (b, q-block) grid cells.
    if B == 1 and S // tq < 2 and S >= 16:
        tq = _pick_block(S, max(8, S // 2))
    n_q = S // tq
    n_k = S // tk

    lane = 128
    d_pad = ((d + lane - 1) // lane) * lane
    k2_bytes = (2 * (tq + 2 * tk) * E * itemsize     # q/k/v tiles (double-buffered)
                + 2 * (E * E * itemsize + E * 4)     # wo, bo
                + 2 * tq * E * 4                     # output tile
                + 2 * H * tq * lane * 4              # m, l scratch (lane-padded)
                + H * tq * d_pad * 4                 # acc scratch
                + 4 * tq * tk * 4                    # s / p f32 temporaries
                + tq * E * 4)                        # finalize accumulator

    kernel2 = functools.partial(_flash_mhsa_kernel, num_heads=H, head_dim=d)
    out = pl.pallas_call(
        kernel2,
        out_shape=jax.ShapeDtypeStruct((B, S, E), x.dtype),
        grid_spec=pltpu.PrefetchScalarGridSpec(
            num_scalar_prefetch=0,
            grid=(B, n_q, n_k),
            in_specs=[
                pl.BlockSpec((1, tq, E), lambda b, qi, ki: (b, qi, 0)),   # q block
                pl.BlockSpec((1, tk, E), lambda b, qi, ki: (b, ki, 0)),   # k block
                pl.BlockSpec((1, tk, E), lambda b, qi, ki: (b, ki, 0)),   # v block
                pl.BlockSpec((E, E), lambda b, qi, ki: (0, 0)),           # wo (grid-invariant)
                pl.BlockSpec((1, E), lambda b, qi, ki: (0, 0)),           # bo
            ],
            out_specs=pl.BlockSpec((1, tq, E), lambda b, qi, ki: (b, qi, 0)),
            scratch_shapes=[
                pltpu.VMEM((H, tq, 1), jnp.float32),   # m: per-head running max
                pltpu.VMEM((H, tq, 1), jnp.float32),   # l: per-head running sum
                pltpu.VMEM((H, tq, d), jnp.float32),   # acc: per-head context
            ],
        ),
        compiler_params=pltpu.CompilerParams(
            dimension_semantics=("parallel", "parallel", "arbitrary"),
            vmem_limit_bytes=_vmem_limit(k2_bytes + (4 << 20))),
    )(q3, k3, v3, wo, bo)

    return out


# ---------------------------------------------------------------------------
# Pure-JAX reference (torch.nn.MultiheadAttention forward, no mask / dropout)
# ---------------------------------------------------------------------------
def _reference(x, in_proj_weight, in_proj_bias, out_proj_weight, out_proj_bias, num_heads):
    B, S, E = x.shape
    H = num_heads
    d = E // H
    hi = jax.lax.Precision.HIGHEST
    qkv = jnp.einsum('bse,fe->bsf', x, in_proj_weight, precision=hi) + in_proj_bias
    q, k, v = jnp.split(qkv, 3, axis=-1)
    q = q.reshape(B, S, H, d).transpose(0, 2, 1, 3)
    k = k.reshape(B, S, H, d).transpose(0, 2, 1, 3)
    v = v.reshape(B, S, H, d).transpose(0, 2, 1, 3)
    scores = jnp.einsum('bhqd,bhkd->bhqk', q, k, precision=hi) / math.sqrt(d)
    p = jax.nn.softmax(scores, axis=-1)
    ctx = jnp.einsum('bhqk,bhkd->bhqd', p, v, precision=hi)
    ctx = ctx.transpose(0, 2, 1, 3).reshape(B, S, E)
    return jnp.einsum('bse,fe->bsf', ctx, out_proj_weight, precision=hi) + out_proj_bias


if __name__ == "__main__":
    # Small shapes consistent with the module: batch=2, seq=8, embed_dim=32, heads=4.
    B, S, E, H = 2, 8, 32, 4

    key = jax.random.PRNGKey(0)
    kx, k1, k2, k3, k4 = jax.random.split(key, 5)

    x = jax.random.normal(kx, (B, S, E), dtype=jnp.float32)

    bound_in = math.sqrt(6.0 / (E + E))
    in_proj_weight = jax.random.uniform(k1, (3 * E, E), jnp.float32, -bound_in, bound_in)
    in_proj_bias = jax.random.uniform(k2, (3 * E,), jnp.float32, -0.1, 0.1)
    out_proj_weight = jax.random.uniform(k3, (E, E), jnp.float32, -bound_in, bound_in)
    out_proj_bias = jax.random.uniform(k4, (E,), jnp.float32, -0.1, 0.1)

    ref = _reference(x, in_proj_weight, in_proj_bias, out_proj_weight, out_proj_bias, H)

    # 1) f32-operand path: checks the kernel math.  Tolerance allows for the MXU's
    #    default f32 matmul precision (which may internally use bf16 passes).
    out_f32 = multi_head_self_attention(
        x, in_proj_weight, in_proj_bias, out_proj_weight, out_proj_bias,
        num_heads=H, mxu_dtype=jnp.float32)
    out_f32 = jax.block_until_ready(out_f32)
    assert out_f32.shape == (B, S, E)
    err32 = float(jnp.max(jnp.abs(out_f32 - ref)))
    assert jnp.allclose(out_f32, ref, atol=5e-2, rtol=5e-2), (
        f"f32-path mismatch vs reference (max abs err {err32:.2e})")

    # 2) Default bf16-MXU path (production config): looser tolerance from bf16 operands.
    out_bf16 = multi_head_self_attention(
        x, in_proj_weight, in_proj_bias, out_proj_weight, out_proj_bias, num_heads=H)
    out_bf16 = jax.block_until_ready(out_bf16)
    assert out_bf16.shape == (B, S, E)
    err16 = float(jnp.max(jnp.abs(out_bf16 - ref)))
    assert jnp.allclose(out_bf16, ref, atol=1e-1, rtol=5e-2), (
        f"bf16-path mismatch vs reference (max abs err {err16:.2e})")

    print("KERNEL_OK")
</pallas_src>

<mosaic_0001>
module attributes {stable_mosaic.version = 11 : i64} {
  func.func @_qkv_proj_kernel(%arg0: i32, %arg1: memref<16x32xf32, #tpu.memory_space<vmem>>, %arg2: memref<32x32xf32, #tpu.memory_space<vmem>>, %arg3: memref<32x32xf32, #tpu.memory_space<vmem>>, %arg4: memref<32x32xf32, #tpu.memory_space<vmem>>, %arg5: memref<1x32xf32, #tpu.memory_space<vmem>>, %arg6: memref<1x32xf32, #tpu.memory_space<vmem>>, %arg7: memref<1x32xf32, #tpu.memory_space<vmem>>, %arg8: memref<16x32xf32, #tpu.memory_space<vmem>>, %arg9: memref<16x32xf32, #tpu.memory_space<vmem>>, %arg10: memref<16x32xf32, #tpu.memory_space<vmem>>) attributes {dimension_semantics = [#tpu.dimension_semantics<parallel>], iteration_bounds = array<i64: 1>, scalar_prefetch = 0 : i64, scratch_operands = 0 : i64, tpu.core_type = #tpu.core_type<tc>, window_params = [{transform_indices = @transform_0, window_bounds = array<i64: 16, 32>}, {pipeline_mode = #tpu.pipeline_mode<synchronous>, transform_indices = @transform_1, window_bounds = array<i64: 32, 32>}, {pipeline_mode = #tpu.pipeline_mode<synchronous>, transform_indices = @transform_2, window_bounds = array<i64: 32, 32>}, {pipeline_mode = #tpu.pipeline_mode<synchronous>, transform_indices = @transform_3, window_bounds = array<i64: 32, 32>}, {pipeline_mode = #tpu.pipeline_mode<synchronous>, transform_indices = @transform_4, window_bounds = array<i64: 1, 32>}, {pipeline_mode = #tpu.pipeline_mode<synchronous>, transform_indices = @transform_5, window_bounds = array<i64: 1, 32>}, {pipeline_mode = #tpu.pipeline_mode<synchronous>, transform_indices = @transform_6, window_bounds = array<i64: 1, 32>}, {transform_indices = @transform_7, window_bounds = array<i64: 16, 32>}, {transform_indices = @transform_8, window_bounds = array<i64: 16, 32>}, {transform_indices = @transform_9, window_bounds = array<i64: 16, 32>}]} {
    %c0 = arith.constant 0 : index
    %c0_0 = arith.constant 0 : index
    %0 = vector.load %arg1[%c0, %c0_0] : memref<16x32xf32, #tpu.memory_space<vmem>>, vector<16x32xf32>
    %c0_1 = arith.constant 0 : index
    %c0_2 = arith.constant 0 : index
    %1 = vector.load %arg2[%c0_1, %c0_2] : memref<32x32xf32, #tpu.memory_space<vmem>>, vector<32x32xf32>
    %cst = arith.constant dense<0.000000e+00> : vector<16x32xf32>
    %2 = tpu.matmul %0, %1, %cst {dimension_numbers = #tpu.dot_dimension_numbers<[1], [0], [0], [1], [0, 0, 1, 1], [], []>} : vector<16x32xf32>, vector<32x32xf32>, vector<16x32xf32> -> vector<16x32xf32>
    %c0_3 = arith.constant 0 : index
    %c0_4 = arith.constant 0 : index
    %3 = vector.load %arg5[%c0_3, %c0_4] : memref<1x32xf32, #tpu.memory_space<vmem>>, vector<1x32xf32>
    %4 = vector.broadcast %3 : vector<1x32xf32> to vector<16x32xf32>
    %5 = arith.addf %2, %4 : vector<16x32xf32>
    %c0_5 = arith.constant 0 : index
    %c0_6 = arith.constant 0 : index
    %6 = vector.load %arg8[%c0_5, %c0_6] : memref<16x32xf32, #tpu.memory_space<vmem>>, vector<16x32xf32>
    tpu.vector_store %arg8[%c0_5, %c0_6], %5 {strides = array<i32>} : memref<16x32xf32, #tpu.memory_space<vmem>>, vector<16x32xf32>,
    %c0_7 = arith.constant 0 : index
    %c0_8 = arith.constant 0 : index
    %7 = vector.load %arg3[%c0_7, %c0_8] : memref<32x32xf32, #tpu.memory_space<vmem>>, vector<32x32xf32>
    %cst_9 = arith.constant dense<0.000000e+00> : vector<16x32xf32>
    %8 = tpu.matmul %0, %7, %cst_9 {dimension_numbers = #tpu.dot_dimension_numbers<[1], [0], [0], [1], [0, 0, 1, 1], [], []>} : vector<16x32xf32>, vector<32x32xf32>, vector<16x32xf32> -> vector<16x32xf32>
    %c0_10 = arith.constant 0 : index
    %c0_11 = arith.constant 0 : index
    %9 = vector.load %arg6[%c0_10, %c0_11] : memref<1x32xf32, #tpu.memory_space<vmem>>, vector<1x32xf32>
    %10 = vector.broadcast %9 : vector<1x32xf32> to vector<16x32xf32>
    %11 = arith.addf %8, %10 : vector<16x32xf32>
    %c0_12 = arith.constant 0 : index
    %c0_13 = arith.constant 0 : index
    %12 = vector.load %arg9[%c0_12, %c0_13] : memref<16x32xf32, #tpu.memory_space<vmem>>, vector<16x32xf32>
    tpu.vector_store %arg9[%c0_12, %c0_13], %11 {strides = array<i32>} : memref<16x32xf32, #tpu.memory_space<vmem>>, vector<16x32xf32>,
    %c0_14 = arith.constant 0 : index
    %c0_15 = arith.constant 0 : index
    %13 = vector.load %arg4[%c0_14, %c0_15] : memref<32x32xf32, #tpu.memory_space<vmem>>, vector<32x32xf32>
    %cst_16 = arith.constant dense<0.000000e+00> : vector<16x32xf32>
    %14 = tpu.matmul %0, %13, %cst_16 {dimension_numbers = #tpu.dot_dimension_numbers<[1], [0], [0], [1], [0, 0, 1, 1], [], []>} : vector<16x32xf32>, vector<32x32xf32>, vector<16x32xf32> -> vector<16x32xf32>
    %c0_17 = arith.constant 0 : index
    %c0_18 = arith.constant 0 : index
    %15 = vector.load %arg7[%c0_17, %c0_18] : memref<1x32xf32, #tpu.memory_space<vmem>>, vector<1x32xf32>
    %16 = vector.broadcast %15 : vector<1x32xf32> to vector<16x32xf32>
    %17 = arith.addf %14, %16 : vector<16x32xf32>
    %c0_19 = arith.constant 0 : index
    %c0_20 = arith.constant 0 : index
    %18 = vector.load %arg10[%c0_19, %c0_20] : memref<16x32xf32, #tpu.memory_space<vmem>>, vector<16x32xf32>
    tpu.vector_store %arg10[%c0_19, %c0_20], %17 {strides = array<i32>} : memref<16x32xf32, #tpu.memory_space<vmem>>, vector<16x32xf32>,
    return
  }
  func.func @transform_0(%arg0: i32) -> (i32, i32) {
    %c0_i32 = arith.constant 0 : i32
    %c0_i32_0 = arith.constant 0 : i32
    return %arg0, %c0_i32 : i32, i32
  }
  func.func @transform_1(%arg0: i32) -> (i32, i32) {
    %c0_i32 = arith.constant 0 : i32
    %c0_i32_0 = arith.constant 0 : i32
    %c0_i32_1 = arith.constant 0 : i32
    return %c0_i32, %c0_i32_0 : i32, i32
  }
  func.func @transform_2(%arg0: i32) -> (i32, i32) {
    %c0_i32 = arith.constant 0 : i32
    %c0_i32_0 = arith.constant 0 : i32
    %c0_i32_1 = arith.constant 0 : i32
    return %c0_i32, %c0_i32_0 : i32, i32
  }
  func.func @transform_3(%arg0: i32) -> (i32, i32) {
    %c0_i32 = arith.constant 0 : i32
    %c0_i32_0 = arith.constant 0 : i32
    %c0_i32_1 = arith.constant 0 : i32
    return %c0_i32, %c0_i32_0 : i32, i32
  }
  func.func @transform_4(%arg0: i32) -> (i32, i32) {
    %c0_i32 = arith.constant 0 : i32
    %c0_i32_0 = arith.constant 0 : i32
    %c0_i32_1 = arith.constant 0 : i32
    return %c0_i32, %c0_i32_0 : i32, i32
  }
  func.func @transform_5(%arg0: i32) -> (i32, i32) {
    %c0_i32 = arith.constant 0 : i32
    %c0_i32_0 = arith.constant 0 : i32
    %c0_i32_1 = arith.constant 0 : i32
    return %c0_i32, %c0_i32_0 : i32, i32
  }
  func.func @transform_6(%arg0: i32) -> (i32, i32) {
    %c0_i32 = arith.constant 0 : i32
    %c0_i32_0 = arith.constant 0 : i32
    %c0_i32_1 = arith.constant 0 : i32
    return %c0_i32, %c0_i32_0 : i32, i32
  }
  func.func @transform_7(%arg0: i32) -> (i32, i32) {
    %c0_i32 = arith.constant 0 : i32
    %c0_i32_0 = arith.constant 0 : i32
    return %arg0, %c0_i32 : i32, i32
  }
  func.func @transform_8(%arg0: i32) -> (i32, i32) {
    %c0_i32 = arith.constant 0 : i32
    %c0_i32_0 = arith.constant 0 : i32
    return %arg0, %c0_i32 : i32, i32
  }
  func.func @transform_9(%arg0: i32) -> (i32, i32) {
    %c0_i32 = arith.constant 0 : i32
    %c0_i32_0 = arith.constant 0 : i32
    return %arg0, %c0_i32 : i32, i32
  }
}

</mosaic_0001>

<llo_original>
// kernel: tpu_custom_call.1
$region0: #{tpu_custom_call.1}
  #allocation0 [shape = 'u32[]', space=smem, size = 0x4, offset = 0x4, fixed_abs, tag = 'smem constant byte address 0x4 - core index']
  #allocation1 [shape = 'u32[144,128]{1,0:T(1,128)}', space=vmem, size = 0x12000, scoped, tag = 'internal scratch']
  %s0 = inlined_call_operand.hbm [shape: f32[16,32], index: 0, kind: input, shape index: {}]
  %s1 = inlined_call_operand.hbm [shape: f32[32,32], index: 1, kind: input, shape index: {}]
  %s2 = inlined_call_operand.hbm [shape: f32[32,32], index: 2, kind: input, shape index: {}]
  %s3 = inlined_call_operand.hbm [shape: f32[32,32], index: 3, kind: input, shape index: {}]
  %s4 = inlined_call_operand.vmem [shape: f32[1,32], index: 4, kind: input, shape index: {}]
  %s5 = inlined_call_operand.vmem [shape: f32[1,32], index: 5, kind: input, shape index: {}]
  %s6 = inlined_call_operand.vmem [shape: f32[1,32], index: 6, kind: input, shape index: {}]
  %s7 = inlined_call_operand.hbm [shape: f32[16,32], index: 7, kind: output, shape index: {0}]
  %s8 = inlined_call_operand.hbm [shape: f32[16,32], index: 8, kind: output, shape index: {1}]
  %s9 = inlined_call_operand.hbm [shape: f32[16,32], index: 9, kind: output, shape index: {2}]
  %10 = xla_tuple %s7, %s8, %s9
  %s11 = sld [smem:[#allocation0]]
  $region70: #{tpu_custom_call.1} parent=0
    _
  %s13 = ssub.s32 1, %s11
  %s14 = scalar_select 0, %s13, %s11
  $region1: #{tpu_custom_call.1} parent=0
    #allocation2 [shape = 'u8[8192]{0}', space=vmem, size = 0x2000, scoped, tag = 'input window, operand 0, single buffered']
    #allocation3 [shape = 's32[1]{0}', space=sflag, size = 0x4, scoped, tag = 'scoped memory for tpu_custom_call.1']
    #allocation4 [shape = 's32[1]{0}', space=sflag, size = 0x4, scoped, tag = 'scoped memory for tpu_custom_call.1']
    #allocation5 [shape = 'u8[16384]{0}', space=vmem, size = 0x4000, scoped, tag = 'input window, operand 1, single buffered']
    #allocation6 [shape = 's32[1]{0}', space=sflag, size = 0x4, scoped, tag = 'scoped memory for tpu_custom_call.1']
    #allocation7 [shape = 'u8[16384]{0}', space=vmem, size = 0x4000, scoped, tag = 'input window, operand 2, single buffered']
    #allocation8 [shape = 'u8[16384]{0}', space=vmem, size = 0x4000, scoped, tag = 'input window, operand 3, single buffered']
    #allocation9 [shape = 's32[1]{0}', space=sflag, size = 0x4, scoped, tag = 'scoped memory for tpu_custom_call.1']
    #allocation10 [shape = 'u8[8192]{0}', space=vmem, size = 0x2000, scoped, tag = 'output window, operand 0, single buffered']
    #allocation11 [shape = 'u8[8192]{0}', space=vmem, size = 0x2000, scoped, tag = 'output window, operand 1, single buffered']
    #allocation12 [shape = 's32[1]{0}', space=sflag, size = 0x4, scoped, tag = 'scoped memory for tpu_custom_call.1']
    #allocation13 [shape = 'u8[8192]{0}', space=vmem, size = 0x2000, scoped, tag = 'output window, operand 2, single buffered']
    %15 = vsyncpa [#allocation3], 0
    %16 = vsyncpa [#allocation6], 0
    %17 = vsyncpa [#allocation9], 0
    %18 = vsyncpa [#allocation4], 0
    %19 = vsyncpa [#allocation12], 0
    // Predicated region
    $region2: #{tpu_custom_call.1} parent=1 // pred_check
      _
    $region3: #{tpu_custom_call.1} parent=1 // pred_check_branch
      %21 = sbr.rel (0) target = $region5
    $region4: #{tpu_custom_call.1} parent=1 // pred_region
      %s23 = ssub.s32 256, 256
      %24 = vsyncadd [#allocation3], %s23
      %s25 = sshll.u32 [#allocation2], 4
      %s26 = int_to_ptr.vmem [resolvable:$true] %s25
      %31 = dma.hbm_to_vmem [thread:$0]  %s0, 256, %s26, [#allocation3], 128, 128, 8
    $region5: #{tpu_custom_call.1} parent=1 // pred_fallthru
      _
    // Predicated region
    $region6: #{tpu_custom_call.1} parent=1 // pred_check
      _
    $region7: #{tpu_custom_call.1} parent=1 // pred_check_branch
      %33 = sbr.rel (0) target = $region9
    $region8: #{tpu_custom_call.1} parent=1 // pred_region
      %s35 = ssub.s32 512, 512
      %36 = vsyncadd [#allocation6], %s35
      %s37 = sshll.u32 [#allocation5], 4
      %s38 = int_to_ptr.vmem [resolvable:$true] %s37
      %43 = dma.hbm_to_vmem [thread:$0]  %s1, 512, %s38, [#allocation6], 128, 128, 8
    $region9: #{tpu_custom_call.1} parent=1 // pred_fallthru
      _
    // Predicated region
    $region10: #{tpu_custom_call.1} parent=1 // pred_check
      _
    $region11: #{tpu_custom_call.1} parent=1 // pred_check_branch
      %45 = sbr.rel (0) target = $region13
    $region12: #{tpu_custom_call.1} parent=1 // pred_region
      %s47 = ssub.s32 512, 512
      %48 = vsyncadd [#allocation6], %s47
      %s49 = sshll.u32 [#allocation7], 4
      %s50 = int_to_ptr.vmem [resolvable:$true] %s49
      %55 = dma.hbm_to_vmem [thread:$0]  %s2, 512, %s50, [#allocation6], 128, 128, 8
    $region13: #{tpu_custom_call.1} parent=1 // pred_fallthru
      _
    // Predicated region
    $region14: #{tpu_custom_call.1} parent=1 // pred_check
      _
    $region15: #{tpu_custom_call.1} parent=1 // pred_check_branch
      %57 = sbr.rel (0) target = $region17
    $region16: #{tpu_custom_call.1} parent=1 // pred_region
      %s59 = ssub.s32 512, 512
      %60 = vsyncadd [#allocation9], %s59
      %s61 = sshll.u32 [#allocation8], 4
      %s62 = int_to_ptr.vmem [resolvable:$true] %s61
      %67 = dma.hbm_to_vmem [thread:$0]  %s3, 512, %s62, [#allocation9], 128, 128, 8
    $region17: #{tpu_custom_call.1} parent=1 // pred_fallthru
      _
    // Predicated region
    $region18: #{tpu_custom_call.1} parent=1 // pred_check
      _
    $region19: #{tpu_custom_call.1} parent=1 // pred_check_branch
      %69 = sbr.rel (0) target = $region21
    $region20: #{tpu_custom_call.1} parent=1 // pred_region
      _
    $region21: #{tpu_custom_call.1} parent=1 // pred_fallthru
      _
    // Predicated region
    $region22: #{tpu_custom_call.1} parent=1 // pred_check
      _
    $region23: #{tpu_custom_call.1} parent=1 // pred_check_branch
      %71 = sbr.rel (0) target = $region25
    $region24: #{tpu_custom_call.1} parent=1 // pred_region
      _
    $region25: #{tpu_custom_call.1} parent=1 // pred_fallthru
      _
    // Predicated region
    $region26: #{tpu_custom_call.1} parent=1 // pred_check
      _
    $region27: #{tpu_custom_call.1} parent=1 // pred_check_branch
      %73 = sbr.rel (0) target = $region29
    $region28: #{tpu_custom_call.1} parent=1 // pred_region
      _
    $region29: #{tpu_custom_call.1} parent=1 // pred_fallthru
      _
    // Predicated region
    $region30: #{tpu_custom_call.1} parent=1 // pred_check
      _
    $region31: #{tpu_custom_call.1} parent=1 // pred_check_branch
      %75 = sbr.rel (0) target = $region33
    $region32: #{tpu_custom_call.1} parent=1 // pred_region
      %76 = dma.done [#allocation3], 256
    $region33: #{tpu_custom_call.1} parent=1 // pred_fallthru
      _
    // Predicated region
    $region34: #{tpu_custom_call.1} parent=1 // pred_check
      _
    $region35: #{tpu_custom_call.1} parent=1 // pred_check_branch
      %78 = sbr.rel (0) target = $region37
    $region36: #{tpu_custom_call.1} parent=1 // pred_region
      %79 = dma.done [#allocation6], 512
    $region37: #{tpu_custom_call.1} parent=1 // pred_fallthru
      _
    // Predicated region
    $region38: #{tpu_custom_call.1} parent=1 // pred_check
      _
    $region39: #{tpu_custom_call.1} parent=1 // pred_check_branch
      %81 = sbr.rel (0) target = $region41
    $region40: #{tpu_custom_call.1} parent=1 // pred_region
      %82 = dma.done [#allocation6], 512
    $region41: #{tpu_custom_call.1} parent=1 // pred_fallthru
      _
    // Predicated region
    $region42: #{tpu_custom_call.1} parent=1 // pred_check
      _
    $region43: #{tpu_custom_call.1} parent=1 // pred_check_branch
      %84 = sbr.rel (0) target = $region45
    $region44: #{tpu_custom_call.1} parent=1 // pred_region
      %85 = dma.done [#allocation9], 512
    $region45: #{tpu_custom_call.1} parent=1 // pred_fallthru
      _
    %v86 = vld [vmem:[#allocation2] sm:$0xff]
    %v87 = vld [vmem:[#allocation2 + $0x8] sm:$0xff]
    %v88 = vld [vmem:[#allocation5] sm:$0xff]
    %v89 = vld [vmem:[#allocation5 + $0x8] sm:$0xff]
    %v90 = vld [vmem:[#allocation5 + $0x10] sm:$0xff]
    %v91 = vld [vmem:[#allocation5 + $0x18] sm:$0xff]
    %v92 = vld [vmem:[%s4] sm:$0x1]
    %v94 = vlaneseq
    %v95 = vshrl.u32 %v94, 7
    %v96 = vsub.s32 0, %v95
    %v97 = vrot.slane %v92, %v96
    %vm99 = vcmask 261120
    %v101 = vsel %vm99, %v86, 0
    %v104 = vsel %vm99, %v87, 0
    %106 = vmatprep.subr.mxu0 0.0
    %107 = vmatpush1.msra.mxu0 %v88
    %108 = vmatprep.subr.mxu0 0.0
    %109 = vmatpush1.msra.mxu0 %v89
    %110 = vmatprep.subr.mxu0 0.0
    %111 = vmatpush1.msra.mxu0 %v90
    %112 = vmatprep.subr.mxu0 0.0
    %113 = vmatpush1.msra.mxu0 %v91
    %114 = vmatprep.subr.mxu0 0.0
    %115 = vmatpush1.msra.mxu0 0.0
    %116 = vmatprep.subr.mxu0 0.0
    %117 = vmatpush1.msra.mxu0 0.0
    %118 = vmatprep.subr.mxu0 0.0
    %119 = vmatpush1.msra.mxu0 0.0
    %120 = vmatprep.subr.mxu0 0.0
    %121 = vmatpush1.msra.mxu0 0.0
    %122 = vmatprep.subr.mxu0 0.0
    %123 = vmatpush1.msra.mxu0 0.0
    %124 = vmatprep.subr.mxu0 0.0
    %125 = vmatpush1.msra.mxu0 0.0
    %126 = vmatprep.subr.mxu0 0.0
    %127 = vmatpush1.msra.mxu0 0.0
    %128 = vmatprep.subr.mxu0 0.0
    %129 = vmatpush1.msra.mxu0 0.0
    %130 = vmatprep.subr.mxu0 0.0
    %131 = vmatpush1.msra.mxu0 0.0
    %132 = vmatprep.subr.mxu0 0.0
    %133 = vmatpush1.msra.mxu0 0.0
    %134 = vmatprep.subr.mxu0 0.0
    %135 = vmatpush1.msra.mxu0 0.0
    %136 = vmatprep.subr.mxu0 0.0
    %137 = vmatpush1.msra.mxu0 0.0
    %138 = vmatprep.subr.mxu0 0.0
    %139 = vmatpush1.msra.mxu0 0.0
    %140 = vmatprep.subr.mxu0 0.0
    %141 = vmatpush1.msra.mxu0 0.0
    %142 = vmatprep.subr.mxu0 0.0
    %143 = vmatpush1.msra.mxu0 0.0
    %144 = vmatprep.subr.mxu0 0.0
    %145 = vmatpush1.msra.mxu0 0.0
    %146 = vmatprep.subr.mxu0 0.0
    %147 = vmatpush1.msra.mxu0 0.0
    %148 = vmatprep.subr.mxu0 0.0
    %149 = vmatpush1.msra.mxu0 0.0
    %150 = vmatprep.subr.mxu0 0.0
    %151 = vmatpush1.msra.mxu0 0.0
    %152 = vmatprep.subr.mxu0 0.0
    %153 = vmatpush1.msra.mxu0 0.0
    %154 = vmatprep.subr.mxu0 0.0
    %155 = vmatpush1.msra.mxu0 0.0
    %156 = vmatprep.subr.mxu0 0.0
    %157 = vmatpush1.msra.mxu0 0.0
    %158 = vmatprep.subr.mxu0 0.0
    %159 = vmatpush1.msra.mxu0 0.0
    %160 = vmatprep.subr.mxu0 0.0
    %161 = vmatpush1.msra.mxu0 0.0
    %162 = vmatprep.subr.mxu0 0.0
    %163 = vmatpush1.msra.mxu0 0.0
    %164 = vmatprep.subr.mxu0 0.0
    %165 = vmatpush1.msra.mxu0 0.0
    %166 = vmatprep.subr.mxu0 0.0
    %167 = vmatpush1.msra.mxu0 0.0
    %168 = vmatprep.subr.mxu0 0.0
    %169 = vmatpush1.msra.mxu0 0.0
    %170 = vmatprep.mubr.f32.mxu0 0.0
    %171 = vmatmul.mubr.f32.gmra.mrb[0].mxu0 %v101
    %v172 = vpop.f32.mrb[0].mxu0
    %v173 = vadd.f32 %v97, %v172
    %v174 = vpop.f32.mrb[0].mxu0
    %175 = vmatprep.mubr.f32.mxu0 0.0
    %176 = vmatmul.mubr.f32.gmra.mrb[0].mxu0 %v104
    %v177 = vpop.f32.mrb[0].mxu0
    %v178 = vadd.f32 %v97, %v177
    %v179 = vpop.f32.mrb[0].mxu0
    %180 = vdwg.mxu0
    %181 = vst.msk [vmem:[#allocation10] sm:$0xff] %vm99, %v173
    %182 = vst.msk [vmem:[#allocation10 + $0x8] sm:$0xff] %vm99, %v178
    %v183 = vld [vmem:[#allocation7] sm:$0xff]
    %v184 = vld [vmem:[#allocation7 + $0x8] sm:$0xff]
    %v185 = vld [vmem:[#allocation7 + $0x10] sm:$0xff]
    %v186 = vld [vmem:[#allocation7 + $0x18] sm:$0xff]
    %v187 = vld [vmem:[%s5] sm:$0x1]
    %v189 = vlaneseq
    %v190 = vshrl.u32 %v189, 7
    %v191 = vsub.s32 0, %v190
    %v192 = vrot.slane %v187, %v191
    %194 = vmatprep.subr.mxu0 0.0
    %195 = vmatpush1.msra.mxu0 %v183
    %196 = vmatprep.subr.mxu0 0.0
    %197 = vmatpush1.msra.mxu0 %v184
    %198 = vmatprep.subr.mxu0 0.0
    %199 = vmatpush1.msra.mxu0 %v185
    %200 = vmatprep.subr.mxu0 0.0
    %201 = vmatpush1.msra.mxu0 %v186
    %202 = vmatprep.subr.mxu0 0.0
    %203 = vmatpush1.msra.mxu0 0.0
    %204 = vmatprep.subr.mxu0 0.0
    %205 = vmatpush1.msra.mxu0 0.0
    %206 = vmatprep.subr.mxu0 0.0
    %207 = vmatpush1.msra.mxu0 0.0
    %208 = vmatprep.subr.mxu0 0.0
    %209 = vmatpush1.msra.mxu0 0.0
    %210 = vmatprep.subr.mxu0 0.0
    %211 = vmatpush1.msra.mxu0 0.0
    %212 = vmatprep.subr.mxu0 0.0
    %213 = vmatpush1.msra.mxu0 0.0
    %214 = vmatprep.subr.mxu0 0.0
    %215 = vmatpush1.msra.mxu0 0.0
    %216 = vmatprep.subr.mxu0 0.0
    %217 = vmatpush1.msra.mxu0 0.0
    %218 = vmatprep.subr.mxu0 0.0
    %219 = vmatpush1.msra.mxu0 0.0
    %220 = vmatprep.subr.mxu0 0.0
    %221 = vmatpush1.msra.mxu0 0.0
    %222 = vmatprep.subr.mxu0 0.0
    %223 = vmatpush1.msra.mxu0 0.0
    %224 = vmatprep.subr.mxu0 0.0
    %225 = vmatpush1.msra.mxu0 0.0
    %226 = vmatprep.subr.mxu0 0.0
    %227 = vmatpush1.msra.mxu0 0.0
    %228 = vmatprep.subr.mxu0 0.0
    %229 = vmatpush1.msra.mxu0 0.0
    %230 = vmatprep.subr.mxu0 0.0
    %231 = vmatpush1.msra.mxu0 0.0
    %232 = vmatprep.subr.mxu0 0.0
    %233 = vmatpush1.msra.mxu0 0.0
    %234 = vmatprep.subr.mxu0 0.0
    %235 = vmatpush1.msra.mxu0 0.0
    %236 = vmatprep.subr.mxu0 0.0
    %237 = vmatpush1.msra.mxu0 0.0
    %238 = vmatprep.subr.mxu0 0.0
    %239 = vmatpush1.msra.mxu0 0.0
    %240 = vmatprep.subr.mxu0 0.0
    %241 = vmatpush1.msra.mxu0 0.0
    %242 = vmatprep.subr.mxu0 0.0
    %243 = vmatpush1.msra.mxu0 0.0
    %244 = vmatprep.subr.mxu0 0.0
    %245 = vmatpush1.msra.mxu0 0.0
    %246 = vmatprep.subr.mxu0 0.0
    %247 = vmatpush1.msra.mxu0 0.0
    %248 = vmatprep.subr.mxu0 0.0
    %249 = vmatpush1.msra.mxu0 0.0
    %250 = vmatprep.subr.mxu0 0.0
    %251 = vmatpush1.msra.mxu0 0.0
    %252 = vmatprep.subr.mxu0 0.0
    %253 = vmatpush1.msra.mxu0 0.0
    %254 = vmatprep.subr.mxu0 0.0
    %255 = vmatpush1.msra.mxu0 0.0
    %256 = vmatprep.subr.mxu0 0.0
    %257 = vmatpush1.msra.mxu0 0.0
    %258 = vmatprep.mubr.f32.mxu0 0.0
    %259 = vmatmul.mubr.f32.gmra.mrb[0].mxu0 %v101
    %v260 = vpop.f32.mrb[0].mxu0
    %v261 = vadd.f32 %v192, %v260
    %v262 = vpop.f32.mrb[0].mxu0
    %263 = vmatprep.mubr.f32.mxu0 0.0
    %264 = vmatmul.mubr.f32.gmra.mrb[0].mxu0 %v104
    %v265 = vpop.f32.mrb[0].mxu0
    %v266 = vadd.f32 %v192, %v265
    %v267 = vpop.f32.mrb[0].mxu0
    %268 = vdwg.mxu0
    %269 = vst.msk [vmem:[#allocation11] sm:$0xff] %vm99, %v261
    %270 = vst.msk [vmem:[#allocation11 + $0x8] sm:$0xff] %vm99, %v266
    %v271 = vld [vmem:[#allocation8] sm:$0xff]
    %v272 = vld [vmem:[#allocation8 + $0x8] sm:$0xff]
    %v273 = vld [vmem:[#allocation8 + $0x10] sm:$0xff]
    %v274 = vld [vmem:[#allocation8 + $0x18] sm:$0xff]
    %v275 = vld [vmem:[%s6] sm:$0x1]
    %v277 = vlaneseq
    %v278 = vshrl.u32 %v277, 7
    %v279 = vsub.s32 0, %v278
    %v280 = vrot.slane %v275, %v279
    %282 = vmatprep.subr.mxu0 0.0
    %283 = vmatpush1.msra.mxu0 %v271
    %284 = vmatprep.subr.mxu0 0.0
    %285 = vmatpush1.msra.mxu0 %v272
    %286 = vmatprep.subr.mxu0 0.0
    %287 = vmatpush1.msra.mxu0 %v273
    %288 = vmatprep.subr.mxu0 0.0
    %289 = vmatpush1.msra.mxu0 %v274
    %290 = vmatprep.subr.mxu0 0.0
    %291 = vmatpush1.msra.mxu0 0.0
    %292 = vmatprep.subr.mxu0 0.0
    %293 = vmatpush1.msra.mxu0 0.0
    %294 = vmatprep.subr.mxu0 0.0
    %295 = vmatpush1.msra.mxu0 0.0
    %296 = vmatprep.subr.mxu0 0.0
    %297 = vmatpush1.msra.mxu0 0.0
    %298 = vmatprep.subr.mxu0 0.0
    %299 = vmatpush1.msra.mxu0 0.0
    %300 = vmatprep.subr.mxu0 0.0
    %301 = vmatpush1.msra.mxu0 0.0
    %302 = vmatprep.subr.mxu0 0.0
    %303 = vmatpush1.msra.mxu0 0.0
    %304 = vmatprep.subr.mxu0 0.0
    %305 = vmatpush1.msra.mxu0 0.0
    %306 = vmatprep.subr.mxu0 0.0
    %307 = vmatpush1.msra.mxu0 0.0
    %308 = vmatprep.subr.mxu0 0.0
    %309 = vmatpush1.msra.mxu0 0.0
    %310 = vmatprep.subr.mxu0 0.0
    %311 = vmatpush1.msra.mxu0 0.0
    %312 = vmatprep.subr.mxu0 0.0
    %313 = vmatpush1.msra.mxu0 0.0
    %314 = vmatprep.subr.mxu0 0.0
    %315 = vmatpush1.msra.mxu0 0.0
    %316 = vmatprep.subr.mxu0 0.0
    %317 = vmatpush1.msra.mxu0 0.0
    %318 = vmatprep.subr.mxu0 0.0
    %319 = vmatpush1.msra.mxu0 0.0
    %320 = vmatprep.subr.mxu0 0.0
    %321 = vmatpush1.msra.mxu0 0.0
    %322 = vmatprep.subr.mxu0 0.0
    %323 = vmatpush1.msra.mxu0 0.0
    %324 = vmatprep.subr.mxu0 0.0
    %325 = vmatpush1.msra.mxu0 0.0
    %326 = vmatprep.subr.mxu0 0.0
    %327 = vmatpush1.msra.mxu0 0.0
    %328 = vmatprep.subr.mxu0 0.0
    %329 = vmatpush1.msra.mxu0 0.0
    %330 = vmatprep.subr.mxu0 0.0
    %331 = vmatpush1.msra.mxu0 0.0
    %332 = vmatprep.subr.mxu0 0.0
    %333 = vmatpush1.msra.mxu0 0.0
    %334 = vmatprep.subr.mxu0 0.0
    %335 = vmatpush1.msra.mxu0 0.0
    %336 = vmatprep.subr.mxu0 0.0
    %337 = vmatpush1.msra.mxu0 0.0
    %338 = vmatprep.subr.mxu0 0.0
    %339 = vmatpush1.msra.mxu0 0.0
    %340 = vmatprep.subr.mxu0 0.0
    %341 = vmatpush1.msra.mxu0 0.0
    %342 = vmatprep.subr.mxu0 0.0
    %343 = vmatpush1.msra.mxu0 0.0
    %344 = vmatprep.subr.mxu0 0.0
    %345 = vmatpush1.msra.mxu0 0.0
    %346 = vmatprep.mubr.f32.mxu0 0.0
    %347 = vmatmul.mubr.f32.gmra.mrb[0].mxu0 %v101
    %v348 = vpop.f32.mrb[0].mxu0
    %v349 = vadd.f32 %v280, %v348
    %v350 = vpop.f32.mrb[0].mxu0
    %351 = vmatprep.mubr.f32.mxu0 0.0
    %352 = vmatmul.mubr.f32.gmra.mrb[0].mxu0 %v104
    %v353 = vpop.f32.mrb[0].mxu0
    %v354 = vadd.f32 %v280, %v353
    %v355 = vpop.f32.mrb[0].mxu0
    %356 = vdwg.mxu0
    %357 = vst.msk [vmem:[#allocation13] sm:$0xff] %vm99, %v349
    %358 = vst.msk [vmem:[#allocation13 + $0x8] sm:$0xff] %vm99, %v354
    // Predicated region
    $region46: #{tpu_custom_call.1} parent=1 // pred_check
      _
    $region47: #{tpu_custom_call.1} parent=1 // pred_check_branch
      %360 = sbr.rel (0) target = $region49
    $region48: #{tpu_custom_call.1} parent=1 // pred_region
      %s362 = ssub.s32 256, 256
      %363 = vsyncadd [#allocation4], %s362
      %s364 = sshll.u32 [#allocation10], 4
      %s365 = int_to_ptr.vmem [resolvable:$true] %s364
      %370 = dma.vmem_to_hbm [thread:$0]  %s365, 256, %s7, [#allocation4], 128, 128, 8
    $region49: #{tpu_custom_call.1} parent=1 // pred_fallthru
      _
    // Predicated region
    $region50: #{tpu_custom_call.1} parent=1 // pred_check
      _
    $region51: #{tpu_custom_call.1} parent=1 // pred_check_branch
      %372 = sbr.rel (0) target = $region53
    $region52: #{tpu_custom_call.1} parent=1 // pred_region
      %s374 = ssub.s32 256, 256
      %375 = vsyncadd [#allocation12], %s374
      %s376 = sshll.u32 [#allocation11], 4
      %s377 = int_to_ptr.vmem [resolvable:$true] %s376
      %382 = dma.vmem_to_hbm [thread:$0]  %s377, 256, %s8, [#allocation12], 128, 128, 8
    $region53: #{tpu_custom_call.1} parent=1 // pred_fallthru
      _
    // Predicated region
    $region54: #{tpu_custom_call.1} parent=1 // pred_check
      _
    $region55: #{tpu_custom_call.1} parent=1 // pred_check_branch
      %384 = sbr.rel (0) target = $region57
    $region56: #{tpu_custom_call.1} parent=1 // pred_region
      %s386 = ssub.s32 256, 256
      %387 = vsyncadd [#allocation12], %s386
      %s388 = sshll.u32 [#allocation13], 4
      %s389 = int_to_ptr.vmem [resolvable:$true] %s388
      %394 = dma.vmem_to_hbm [thread:$0]  %s389, 256, %s9, [#allocation12], 128, 128, 8
    $region57: #{tpu_custom_call.1} parent=1 // pred_fallthru
      _
    // Predicated region
    $region58: #{tpu_custom_call.1} parent=1 // pred_check
      _
    $region59: #{tpu_custom_call.1} parent=1 // pred_check_branch
      %396 = sbr.rel (0) target = $region61
    $region60: #{tpu_custom_call.1} parent=1 // pred_region
      %397 = dma.done [#allocation4], 256
    $region61: #{tpu_custom_call.1} parent=1 // pred_fallthru
      _
    // Predicated region
    $region62: #{tpu_custom_call.1} parent=1 // pred_check
      _
    $region63: #{tpu_custom_call.1} parent=1 // pred_check_branch
      %399 = sbr.rel (0) target = $region65
    $region64: #{tpu_custom_call.1} parent=1 // pred_region
      %400 = dma.done [#allocation12], 256
    $region65: #{tpu_custom_call.1} parent=1 // pred_fallthru
      _
    // Predicated region
    $region66: #{tpu_custom_call.1} parent=1 // pred_check
      _
    $region67: #{tpu_custom_call.1} parent=1 // pred_check_branch
      %402 = sbr.rel (0) target = $region69
    $region68: #{tpu_custom_call.1} parent=1 // pred_region
      %403 = dma.done [#allocation12], 256
    $region69: #{tpu_custom_call.1} parent=1 // pred_fallthru
      _
    %404 = vsyncpa [#allocation3], 1
    %405 = vsyncpa [#allocation6], 1
    %406 = vsyncpa [#allocation9], 1
    %407 = vsyncpa [#allocation4], 1
    %408 = vsyncpa [#allocation12], 1

</llo_original>
